<compile_context>
chip_gen: v7x
topology: tpu7x:2x2x1
jax: 0.10.0
libtpu: 0.0.40
codegen_flags: <defaults>
</compile_context>

<pallas_src>
import functools

import jax
import jax.numpy as jnp
import numpy as np
from jax import lax
from jax.experimental import pallas as pl
from jax.experimental.pallas import tpu as pltpu


def _round_up(x, m):
    return (x + m - 1) // m * m


# Contract the feature (last) dim of both operands -> (M, N) without a .T copy.
_CONTRACT_LAST = (((1,), (1,)), ((), ()))

_MXU_DTYPE = jnp.bfloat16   # MXU operand dtype (f32 accumulate); native throughput.


def _l2_normalize_f32(x):
    # Row L2 normalization in f32. No eps: matches torch x / x.norm(dim=1)
    # (an all-zero row yields inf/NaN, same as the reference module).
    xf = x.astype(jnp.float32)
    return xf * lax.rsqrt(jnp.sum(xf * xf, axis=1, keepdims=True))


def _pad2d(x, n_pad, d_pad):
    n, d = x.shape
    if n == n_pad and d == d_pad:      # static: skip the HBM round trip when aligned
        return x
    return jnp.pad(x, ((0, n_pad - n), (0, d_pad - d)))


def _tpu_vmem_capacity():
    try:
        return int(pltpu.get_tpu_info().vmem_capacity_bytes)
    except Exception:
        return 64 * 1024 * 1024        # conservative (v7x per-core physical VMEM)


def _select_tm(n_pad):
    kind = ""
    try:
        kind = jax.devices()[0].device_kind.lower()
    except Exception:
        pass
    # v5-family MXUs are 128x128: 256-row tiles buy nothing and double f32 temps.
    if "v5" in kind:
        return 128
    return 256 if n_pad % 256 == 0 else 128


# ------------------------------- kernels ------------------------------------


def _clip_loss_kernel(img_ref, txt_ref, bias_ref, out_ref, *, tm, n_valid, masked):
    """One grid step = one row tile of the (padded) batch.

    img_ref : (n_pad, d_pad) bf16  L2-normalized image features * exp(logit_scale)
    txt_ref : (n_pad, d_pad) bf16  L2-normalized text features
    bias_ref: (1, n_pad)     f32   additive column mask (0 valid / -1e30 pad)
    out_ref : (8, 128)       f32   this tile's partial CE sum, broadcast over block
    """
    i = pl.program_id(0)
    r0 = pl.multiple_of(i * tm, tm)

    img_all = img_ref[...]                       # resident, single-buffered
    txt_all = txt_ref[...]
    img_t = img_ref[pl.ds(r0, tm), :]            # (tm, d_pad) row tile (VMEM slice)
    txt_t = txt_ref[pl.ds(r0, tm), :]

    # Row tiles of logits_per_image / logits_per_text (scale pre-folded into img).
    li = lax.dot_general(img_t, txt_all, dimension_numbers=_CONTRACT_LAST,
                         preferred_element_type=jnp.float32)      # (tm, n_pad)
    lt = lax.dot_general(txt_t, img_all, dimension_numbers=_CONTRACT_LAST,
                         preferred_element_type=jnp.float32)

    if masked:                                   # static branch: skipped if aligned
        bias = bias_ref[...]                     # (1, n_pad)
        li = li + bias
        lt = lt + bias

    # Diagonal ("correct pair") logit, shared by image- and text-side CE.
    diag = jnp.sum(img_t.astype(jnp.float32) * txt_t.astype(jnp.float32),
                   axis=1, keepdims=True)        # (tm, 1)

    def lse_rows(x):
        m = jnp.max(x, axis=1, keepdims=True)
        return m + jnp.log(jnp.sum(jnp.exp(x - m), axis=1, keepdims=True))

    per_row = (lse_rows(li) - diag) + (lse_rows(lt) - diag)       # (tm, 1)

    if masked:                                   # mask padded rows out of the sum
        row_valid = (r0 + lax.broadcasted_iota(jnp.int32, (tm, 1), 0)) < n_valid
        per_row = jnp.where(row_valid, per_row, 0.0)

    out_ref[...] = jnp.full((8, 128), jnp.sum(per_row), dtype=jnp.float32)


def _clip_logits_kernel(img_ref, txt_ref, out_ref):
    """cal_similarity=True: one (tm, n_pad) row tile of logits_per_image."""
    out_ref[...] = lax.dot_general(
        img_ref[...], txt_ref[...], dimension_numbers=_CONTRACT_LAST,
        preferred_element_type=jnp.float32).astype(out_ref.dtype)


# ------------------------------- wrapper ------------------------------------


def clip_loss(image_features, text_features, logit_scale, cal_similarity=False):
    n, d = image_features.shape
    assert text_features.shape == (n, d)
    out_dtype = image_features.dtype

    n_pad = _round_up(n, 128)                    # lane-dense logits columns
    d_pad = _round_up(d, 128)                    # full MXU contraction lanes
    vmem_cap = _tpu_vmem_capacity()
    mxu_isz = jnp.dtype(_MXU_DTYPE).itemsize

    tm = _select_tm(n_pad)
    # Drop to 128-row tiles if the per-tile f32 logits/exp temporaries would not fit.
    if tm == 256 and (2 * n_pad * d_pad * mxu_isz + 10 * tm * n_pad * 4) > int(0.8 * vmem_cap):
        tm = 128
    num_tiles = n_pad // tm

    # One-time normalization (f32 rsqrt) + fold exp(logit_scale) into the image
    # side, then a single cast to bf16 MXU operands and zero-padding.
    scale = jnp.exp(jnp.asarray(logit_scale, jnp.float32))
    img_n = (_l2_normalize_f32(image_features) * scale).astype(_MXU_DTYPE)
    txt_n = _l2_normalize_f32(text_features).astype(_MXU_DTYPE)
    img_p = _pad2d(img_n, n_pad, d_pad)
    txt_p = _pad2d(txt_n, n_pad, d_pad)

    masked = n != n_pad
    if masked:
        col_bias = jnp.where(jnp.arange(n_pad) < n, 0.0, -1e30)
        col_bias = col_bias.astype(jnp.float32).reshape(1, n_pad)
    else:
        col_bias = jnp.zeros((1, n_pad), jnp.float32)

    # Constant-index blocks: resident in VMEM, single-buffered (no wasted 2nd buffer).
    img_full_spec = pl.BlockSpec((n_pad, d_pad), index_map=lambda i: (0, 0),
                                 pipeline_mode=pl.Buffered(1))
    txt_full_spec = pl.BlockSpec((n_pad, d_pad), index_map=lambda i: (0, 0),
                                 pipeline_mode=pl.Buffered(1))
    bias_spec = pl.BlockSpec((1, n_pad), index_map=lambda i: (0, 0),
                             pipeline_mode=pl.Buffered(1))

    if cal_similarity:
        budget = (n_pad * d_pad * mxu_isz                                # resident txt
                  + 2 * tm * d_pad * mxu_isz                             # img row tile (2 buf)
                  + 2 * tm * n_pad * jnp.dtype(out_dtype).itemsize       # out tile (2 buf)
                  + 2 * tm * n_pad * 4)                                  # f32 matmul temp
        vmem_limit = int(min(vmem_cap, max(2 * budget, 32 << 20)))
        logits = pl.pallas_call(
            _clip_logits_kernel,
            out_shape=jax.ShapeDtypeStruct((n_pad, n_pad), out_dtype),
            grid=(num_tiles,),
            in_specs=[pl.BlockSpec((tm, d_pad), lambda i: (i, 0)),
                      txt_full_spec],
            out_specs=pl.BlockSpec((tm, n_pad), lambda i: (i, 0)),
            compiler_params=pltpu.CompilerParams(
                dimension_semantics=("parallel",),
                vmem_limit_bytes=vmem_limit),
        )(img_p, txt_p)
        if masked:                                # static: skipped for aligned batches
            logits = logits[:n, :n]
        return logits

    budget = (2 * n_pad * d_pad * mxu_isz                                # resident img/txt
              + n_pad * 4                                                # bias row
              + 10 * tm * n_pad * 4                                      # li/lt + exp temps
              + 2 * 8 * 128 * 4)                                         # partial-sum blocks
    vmem_limit = int(min(vmem_cap, max(2 * budget, 32 << 20)))

    partials = pl.pallas_call(
        functools.partial(_clip_loss_kernel, tm=tm, n_valid=n, masked=masked),
        out_shape=jax.ShapeDtypeStruct((num_tiles * 8, 128), jnp.float32),
        grid=(num_tiles,),
        in_specs=[img_full_spec, txt_full_spec, bias_spec],
        out_specs=pl.BlockSpec((8, 128), lambda i: (i, 0)),
        compiler_params=pltpu.CompilerParams(
            dimension_semantics=("parallel",),      # independent tiles -> megacore-friendly
            vmem_limit_bytes=vmem_limit),
    )(img_p, txt_p, col_bias)

    total = jnp.sum(partials[::8, 0])               # one partial sum per row tile
    return 0.5 * total / n


# ---------------------------- pure-JAX reference ----------------------------


def _reference_logits(image_features, text_features, logit_scale):
    img = image_features / jnp.linalg.norm(image_features, axis=1, keepdims=True)
    txt = text_features / jnp.linalg.norm(text_features, axis=1, keepdims=True)
    return jnp.exp(logit_scale) * img @ txt.T


def _reference(image_features, text_features, logit_scale):
    logits = _reference_logits(image_features, text_features, logit_scale)
    labels = jnp.arange(logits.shape[0])

    def ce(lg):
        lse = jax.scipy.special.logsumexp(lg, axis=1)
        return jnp.mean(lse - lg[jnp.arange(lg.shape[0]), labels])

    return 0.5 * (ce(logits) + ce(logits.T))


if __name__ == "__main__":
    key = jax.random.PRNGKey(0)
    k1, k2 = jax.random.split(key)

    N, D = 8, 32   # batch of paired image/text embeddings, hidden=32
    image_features = jax.random.normal(k1, (N, D), dtype=jnp.float32)
    text_features = jax.random.normal(k2, (N, D), dtype=jnp.float32)

    # nn.Parameter(torch.ones([]) * np.log(1 / 0.07)) — deterministic init.
    logit_scale = jnp.float32(np.log(1.0 / 0.07))

    # Loss path (f32 inputs; bf16 MXU operands with f32 accumulate -> looser tol).
    loss = clip_loss(image_features, text_features, logit_scale)
    jax.block_until_ready(loss)
    ref = _reference(image_features, text_features, logit_scale)
    np.testing.assert_allclose(np.asarray(loss), np.asarray(ref), rtol=2e-2, atol=2e-2)

    # cal_similarity=True path (logits_per_image).
    logits = clip_loss(image_features, text_features, logit_scale, cal_similarity=True)
    jax.block_until_ready(logits)
    ref_logits = _reference_logits(image_features, text_features, logit_scale)
    np.testing.assert_allclose(np.asarray(logits), np.asarray(ref_logits),
                               rtol=2e-2, atol=1e-1)

    # 128-aligned batch: exercises the no-padding / no-masking static path.
    k3, k4 = jax.random.split(k2)
    img_a = jax.random.normal(k3, (128, 128), dtype=jnp.float32)
    txt_a = jax.random.normal(k4, (128, 128), dtype=jnp.float32)
    loss_a = clip_loss(img_a, txt_a, logit_scale)
    jax.block_until_ready(loss_a)
    ref_a = _reference(img_a, txt_a, logit_scale)
    np.testing.assert_allclose(np.asarray(loss_a), np.asarray(ref_a),
                               rtol=2e-2, atol=2e-2)

    # bf16 feature path: normalization stays f32, MXU operands bf16 (f32 acc).
    img_bf = image_features.astype(jnp.bfloat16)
    txt_bf = text_features.astype(jnp.bfloat16)
    loss_bf = clip_loss(img_bf, txt_bf, logit_scale)
    jax.block_until_ready(loss_bf)
    ref_bf = _reference(img_bf.astype(jnp.float32), txt_bf.astype(jnp.float32),
                        logit_scale)
    np.testing.assert_allclose(np.asarray(loss_bf), np.asarray(ref_bf),
                               rtol=5e-2, atol=5e-2)

    print("KERNEL_OK")
</pallas_src>

<mosaic_0001>
module attributes {stable_mosaic.version = 11 : i64} {
  func.func @_clip_loss_kernel(%arg0: i32, %arg1: memref<128x128xbf16, #tpu.memory_space<vmem>>, %arg2: memref<128x128xbf16, #tpu.memory_space<vmem>>, %arg3: memref<1x128xf32, #tpu.memory_space<vmem>>, %arg4: memref<8x128xf32, #tpu.memory_space<vmem>>) attributes {dimension_semantics = [#tpu.dimension_semantics<parallel>], iteration_bounds = array<i64: 1>, scalar_prefetch = 0 : i64, scratch_operands = 0 : i64, tpu.core_type = #tpu.core_type<tc>, window_params = [{pipeline_mode = #tpu.pipeline_mode<synchronous>, transform_indices = @transform_0, window_bounds = array<i64: 128, 128>}, {pipeline_mode = #tpu.pipeline_mode<synchronous>, transform_indices = @transform_1, window_bounds = array<i64: 128, 128>}, {pipeline_mode = #tpu.pipeline_mode<synchronous>, transform_indices = @transform_2, window_bounds = array<i64: 1, 128>}, {transform_indices = @transform_3, window_bounds = array<i64: 8, 128>}]} {
    %c128_i32 = arith.constant 128 : i32
    %0 = arith.muli %arg0, %c128_i32 : i32
    %1 = tpu.assume_multiple %0, 128 : i32
    %c0 = arith.constant 0 : index
    %c0_0 = arith.constant 0 : index
    %2 = vector.load %arg1[%c0, %c0_0] : memref<128x128xbf16, #tpu.memory_space<vmem>>, vector<128x128xbf16>
    %c0_1 = arith.constant 0 : index
    %c0_2 = arith.constant 0 : index
    %3 = vector.load %arg2[%c0_1, %c0_2] : memref<128x128xbf16, #tpu.memory_space<vmem>>, vector<128x128xbf16>
    %4 = arith.index_cast %1 : i32 to index
    %c0_3 = arith.constant 0 : index
    %5 = vector.load %arg1[%4, %c0_3] : memref<128x128xbf16, #tpu.memory_space<vmem>>, vector<128x128xbf16>
    %6 = arith.index_cast %1 : i32 to index
    %c0_4 = arith.constant 0 : index
    %7 = vector.load %arg2[%6, %c0_4] : memref<128x128xbf16, #tpu.memory_space<vmem>>, vector<128x128xbf16>
    %cst = arith.constant dense<0.000000e+00> : vector<128x128xf32>
    %8 = tpu.matmul %5, %3, %cst {dimension_numbers = #tpu.dot_dimension_numbers<[1], [1], [0], [0], [0, 0, 1, 0], [], []>} : vector<128x128xbf16>, vector<128x128xbf16>, vector<128x128xf32> -> vector<128x128xf32>
    %cst_5 = arith.constant dense<0.000000e+00> : vector<128x128xf32>
    %9 = tpu.matmul %7, %2, %cst_5 {dimension_numbers = #tpu.dot_dimension_numbers<[1], [1], [0], [0], [0, 0, 1, 0], [], []>} : vector<128x128xbf16>, vector<128x128xbf16>, vector<128x128xf32> -> vector<128x128xf32>
    %c0_6 = arith.constant 0 : index
    %c0_7 = arith.constant 0 : index
    %10 = vector.load %arg3[%c0_6, %c0_7] : memref<1x128xf32, #tpu.memory_space<vmem>>, vector<1x128xf32>
    %11 = vector.broadcast %10 : vector<1x128xf32> to vector<128x128xf32>
    %12 = arith.addf %8, %11 : vector<128x128xf32>
    %13 = vector.broadcast %10 : vector<1x128xf32> to vector<128x128xf32>
    %14 = arith.addf %9, %13 : vector<128x128xf32>
    %15 = arith.extf %5 : vector<128x128xbf16> to vector<128x128xf32>
    %16 = arith.extf %7 : vector<128x128xbf16> to vector<128x128xf32>
    %17 = arith.mulf %15, %16 : vector<128x128xf32>
    %cst_8 = arith.constant dense<0.000000e+00> : vector<128xf32>
    %18 = vector.multi_reduction <add>, %17, %cst_8 [1] : vector<128x128xf32> to vector<128xf32>
    %19 = vector.shape_cast %18 : vector<128xf32> to vector<128x1xf32>
    %cst_9 = arith.constant dense<0xFF800000> : vector<128xf32>
    %20 = vector.multi_reduction <maximumf>, %12, %cst_9 [1] : vector<128x128xf32> to vector<128xf32>
    %21 = vector.shape_cast %20 : vector<128xf32> to vector<128x1xf32>
    %22 = vector.broadcast %21 : vector<128x1xf32> to vector<128x128xf32>
    %23 = arith.subf %12, %22 : vector<128x128xf32>
    %24 = math.exp %23 : vector<128x128xf32>
    %cst_10 = arith.constant dense<0.000000e+00> : vector<128xf32>
    %25 = vector.multi_reduction <add>, %24, %cst_10 [1] : vector<128x128xf32> to vector<128xf32>
    %26 = vector.shape_cast %25 : vector<128xf32> to vector<128x1xf32>
    %27 = math.log %26 : vector<128x1xf32>
    %28 = arith.addf %21, %27 : vector<128x1xf32>
    %29 = arith.subf %28, %19 : vector<128x1xf32>
    %cst_11 = arith.constant dense<0xFF800000> : vector<128xf32>
    %30 = vector.multi_reduction <maximumf>, %14, %cst_11 [1] : vector<128x128xf32> to vector<128xf32>
    %31 = vector.shape_cast %30 : vector<128xf32> to vector<128x1xf32>
    %32 = vector.broadcast %31 : vector<128x1xf32> to vector<128x128xf32>
    %33 = arith.subf %14, %32 : vector<128x128xf32>
    %34 = math.exp %33 : vector<128x128xf32>
    %cst_12 = arith.constant dense<0.000000e+00> : vector<128xf32>
    %35 = vector.multi_reduction <add>, %34, %cst_12 [1] : vector<128x128xf32> to vector<128xf32>
    %36 = vector.shape_cast %35 : vector<128xf32> to vector<128x1xf32>
    %37 = math.log %36 : vector<128x1xf32>
    %38 = arith.addf %31, %37 : vector<128x1xf32>
    %39 = arith.subf %38, %19 : vector<128x1xf32>
    %40 = arith.addf %29, %39 : vector<128x1xf32>
    %41 = tpu.iota {dimensions = array<i32: 0>} : vector<128x1xi32>
    %42 = vector.broadcast %1 : i32 to vector<128x1xi32>
    %43 = arith.addi %42, %41 : vector<128x1xi32>
    %c8_i32 = arith.constant 8 : i32
    %44 = vector.broadcast %c8_i32 : i32 to vector<128x1xi32>
    %45 = arith.cmpi slt, %43, %44 : vector<128x1xi32>
    %cst_13 = arith.constant 0.000000e+00 : f32
    %46 = vector.broadcast %cst_13 : f32 to vector<128x1xf32>
    %47 = arith.select %45, %40, %46 : vector<128x1xi1>, vector<128x1xf32>
    %48 = vector.shape_cast %47 : vector<128x1xf32> to vector<1x128x1xf32>
    %cst_14 = arith.constant dense<0.000000e+00> : vector<1xf32>
    %49 = vector.multi_reduction <add>, %48, %cst_14 [1, 2] : vector<1x128x1xf32> to vector<1xf32>
    %50 = vector.shape_cast %49 : vector<1xf32> to vector<1x1x1xf32>
    %51 = vector.extract %50[0, 0, 0] : f32 from vector<1x1x1xf32>
    %52 = vector.broadcast %51 : f32 to vector<8x128xf32>
    %c0_15 = arith.constant 0 : index
    %c0_16 = arith.constant 0 : index
    %53 = vector.load %arg4[%c0_15, %c0_16] : memref<8x128xf32, #tpu.memory_space<vmem>>, vector<8x128xf32>
    tpu.vector_store %arg4[%c0_15, %c0_16], %52 {strides = array<i32>} : memref<8x128xf32, #tpu.memory_space<vmem>>, vector<8x128xf32>,
    return
  }
  func.func @transform_0(%arg0: i32) -> (i32, i32) {
    %c0_i32 = arith.constant 0 : i32
    %c0_i32_0 = arith.constant 0 : i32
    %c0_i32_1 = arith.constant 0 : i32
    return %c0_i32, %c0_i32_0 : i32, i32
  }
  func.func @transform_1(%arg0: i32) -> (i32, i32) {
    %c0_i32 = arith.constant 0 : i32
    %c0_i32_0 = arith.constant 0 : i32
    %c0_i32_1 = arith.constant 0 : i32
    return %c0_i32, %c0_i32_0 : i32, i32
  }
  func.func @transform_2(%arg0: i32) -> (i32, i32) {
    %c0_i32 = arith.constant 0 : i32
    %c0_i32_0 = arith.constant 0 : i32
    %c0_i32_1 = arith.constant 0 : i32
    return %c0_i32, %c0_i32_0 : i32, i32
  }
  func.func @transform_3(%arg0: i32) -> (i32, i32) {
    %c0_i32 = arith.constant 0 : i32
    %c0_i32_0 = arith.constant 0 : i32
    return %arg0, %c0_i32 : i32, i32
  }
}

</mosaic_0001>

<llo_original>
// kernel: tpu_custom_call.1
$region0: #{tpu_custom_call.1}
  #allocation0 [shape = 'u32[]', space=smem, size = 0x4, offset = 0x4, fixed_abs, tag = 'smem constant byte address 0x4 - core index']
  #allocation1 [shape = 'u32[144,128]{1,0:T(1,128)}', space=vmem, size = 0x12000, scoped, tag = 'internal scratch']
  %s0 = inlined_call_operand.hbm [shape: bf16[128,128], index: 0, kind: input, shape index: {}]
  %s1 = inlined_call_operand.hbm [shape: bf16[128,128], index: 1, kind: input, shape index: {}]
  %s2 = inlined_call_operand.vmem [shape: f32[1,128], index: 2, kind: input, shape index: {}]
  %s3 = inlined_call_operand.hbm [shape: f32[8,128], index: 3, kind: output, shape index: {}]
  %s4 = sld [smem:[#allocation0]]
  $region30: #{tpu_custom_call.1} parent=0
    _
  %s6 = ssub.s32 1, %s4
  %s7 = scalar_select 0, %s6, %s4
  $region1: #{tpu_custom_call.1} parent=0
    #allocation2 [shape = 'u8[32768]{0}', space=vmem, size = 0x8000, scoped, tag = 'input window, operand 0, single buffered']
    #allocation3 [shape = 's32[1]{0}', space=sflag, size = 0x4, scoped, tag = 'scoped memory for tpu_custom_call.1']
    #allocation4 [shape = 's32[1]{0}', space=sflag, size = 0x4, scoped, tag = 'scoped memory for tpu_custom_call.1']
    #allocation5 [shape = 'u8[32768]{0}', space=vmem, size = 0x8000, scoped, tag = 'input window, operand 1, single buffered']
    #allocation6 [shape = 's32[1]{0}', space=sflag, size = 0x4, scoped, tag = 'scoped memory for tpu_custom_call.1']
    #allocation7 [shape = 'u8[4096]{0}', space=vmem, size = 0x1000, scoped, tag = 'output window, operand 0, single buffered']
    %8 = vsyncpa [#allocation3], 0
    %9 = vsyncpa [#allocation6], 0
    %10 = vsyncpa [#allocation4], 0
    // Predicated region
    $region2: #{tpu_custom_call.1} parent=1 // pred_check
      _
    $region3: #{tpu_custom_call.1} parent=1 // pred_check_branch
      %12 = sbr.rel (0) target = $region5
    $region4: #{tpu_custom_call.1} parent=1 // pred_region
      %s14 = ssub.s32 1024, 1024
      %15 = vsyncadd [#allocation3], %s14
      %s16 = sshll.u32 [#allocation2], 4
      %s17 = int_to_ptr.vmem [resolvable:$true] %s16
      %22 = dma.hbm_to_vmem [thread:$0]  %s0, 1024, %s17, [#allocation3], 64, 64, 4
    $region5: #{tpu_custom_call.1} parent=1 // pred_fallthru
      _
    // Predicated region
    $region6: #{tpu_custom_call.1} parent=1 // pred_check
      _
    $region7: #{tpu_custom_call.1} parent=1 // pred_check_branch
      %24 = sbr.rel (0) target = $region9
    $region8: #{tpu_custom_call.1} parent=1 // pred_region
      %s26 = ssub.s32 1024, 1024
      %27 = vsyncadd [#allocation6], %s26
      %s28 = sshll.u32 [#allocation5], 4
      %s29 = int_to_ptr.vmem [resolvable:$true] %s28
      %34 = dma.hbm_to_vmem [thread:$0]  %s1, 1024, %s29, [#allocation6], 64, 64, 4
    $region9: #{tpu_custom_call.1} parent=1 // pred_fallthru
      _
    // Predicated region
    $region10: #{tpu_custom_call.1} parent=1 // pred_check
      _
    $region11: #{tpu_custom_call.1} parent=1 // pred_check_branch
      %36 = sbr.rel (0) target = $region13
    $region12: #{tpu_custom_call.1} parent=1 // pred_region
      _
    $region13: #{tpu_custom_call.1} parent=1 // pred_fallthru
      _
    // Predicated region
    $region14: #{tpu_custom_call.1} parent=1 // pred_check
      _
    $region15: #{tpu_custom_call.1} parent=1 // pred_check_branch
      %38 = sbr.rel (0) target = $region17
    $region16: #{tpu_custom_call.1} parent=1 // pred_region
      %39 = dma.done [#allocation3], 1024
    $region17: #{tpu_custom_call.1} parent=1 // pred_fallthru
      _
    // Predicated region
    $region18: #{tpu_custom_call.1} parent=1 // pred_check
      _
    $region19: #{tpu_custom_call.1} parent=1 // pred_check_branch
      %41 = sbr.rel (0) target = $region21
    $region20: #{tpu_custom_call.1} parent=1 // pred_region
      %42 = dma.done [#allocation6], 1024
    $region21: #{tpu_custom_call.1} parent=1 // pred_fallthru
      _
    %s44 = smul.u32 0, 128
    %v45 = vld [vmem:[#allocation2] sm:$0xf]
    %v46 = vld [vmem:[#allocation2 + $0x4] sm:$0xf]
    %v47 = vld [vmem:[#allocation2 + $0x8] sm:$0xf]
    %v48 = vld [vmem:[#allocation2 + $0xc] sm:$0xf]
    %v49 = vld [vmem:[#allocation2 + $0x10] sm:$0xf]
    %v50 = vld [vmem:[#allocation2 + $0x14] sm:$0xf]
    %v51 = vld [vmem:[#allocation2 + $0x18] sm:$0xf]
    %v52 = vld [vmem:[#allocation2 + $0x1c] sm:$0xf]
    %v53 = vld [vmem:[#allocation2 + $0x20] sm:$0xf]
    %v54 = vld [vmem:[#allocation2 + $0x24] sm:$0xf]
    %v55 = vld [vmem:[#allocation2 + $0x28] sm:$0xf]
    %v56 = vld [vmem:[#allocation2 + $0x2c] sm:$0xf]
    %v57 = vld [vmem:[#allocation2 + $0x30] sm:$0xf]
    %v58 = vld [vmem:[#allocation2 + $0x34] sm:$0xf]
    %v59 = vld [vmem:[#allocation2 + $0x38] sm:$0xf]
    %v60 = vld [vmem:[#allocation2 + $0x3c] sm:$0xf]
    %v61 = vld [vmem:[#allocation5] sm:$0xf]
    %v62 = vld [vmem:[#allocation5 + $0x4] sm:$0xf]
    %v63 = vld [vmem:[#allocation5 + $0x8] sm:$0xf]
    %v64 = vld [vmem:[#allocation5 + $0xc] sm:$0xf]
    %v65 = vld [vmem:[#allocation5 + $0x10] sm:$0xf]
    %v66 = vld [vmem:[#allocation5 + $0x14] sm:$0xf]
    %v67 = vld [vmem:[#allocation5 + $0x18] sm:$0xf]
    %v68 = vld [vmem:[#allocation5 + $0x1c] sm:$0xf]
    %v69 = vld [vmem:[#allocation5 + $0x20] sm:$0xf]
    %v70 = vld [vmem:[#allocation5 + $0x24] sm:$0xf]
    %v71 = vld [vmem:[#allocation5 + $0x28] sm:$0xf]
    %v72 = vld [vmem:[#allocation5 + $0x2c] sm:$0xf]
    %v73 = vld [vmem:[#allocation5 + $0x30] sm:$0xf]
    %v74 = vld [vmem:[#allocation5 + $0x34] sm:$0xf]
    %v75 = vld [vmem:[#allocation5 + $0x38] sm:$0xf]
    %v76 = vld [vmem:[#allocation5 + $0x3c] sm:$0xf]
    %s77 = sshra.s32 %s44, 3
    %s78 = sand.u32 %s44, 7
    %s79 = smul.addr %s77, 4
    %s80 = scalar_lea.vmem [#allocation2], %s79
    %v81 = vld [vmem:[%s80] sm:$0xf]
    %v82 = vld [vmem:[%s80 + $0x4] sm:$0xf]
    %v83 = vld [vmem:[%s80 + $0x8] sm:$0xf]
    %v84 = vld [vmem:[%s80 + $0xc] sm:$0xf]
    %v85 = vld [vmem:[%s80 + $0x10] sm:$0xf]
    %v86 = vld [vmem:[%s80 + $0x14] sm:$0xf]
    %v87 = vld [vmem:[%s80 + $0x18] sm:$0xf]
    %v88 = vld [vmem:[%s80 + $0x1c] sm:$0xf]
    %v89 = vld [vmem:[%s80 + $0x20] sm:$0xf]
    %v90 = vld [vmem:[%s80 + $0x24] sm:$0xf]
    %v91 = vld [vmem:[%s80 + $0x28] sm:$0xf]
    %v92 = vld [vmem:[%s80 + $0x2c] sm:$0xf]
    %v93 = vld [vmem:[%s80 + $0x30] sm:$0xf]
    %v94 = vld [vmem:[%s80 + $0x34] sm:$0xf]
    %v95 = vld [vmem:[%s80 + $0x38] sm:$0xf]
    %v96 = vld [vmem:[%s80 + $0x3c] sm:$0xf]
    %s97 = smul.addr %s77, 4
    %s98 = scalar_lea.vmem [#allocation5], %s97
    %v99 = vld [vmem:[%s98] sm:$0xf]
    %v100 = vld [vmem:[%s98 + $0x4] sm:$0xf]
    %v101 = vld [vmem:[%s98 + $0x8] sm:$0xf]
    %v102 = vld [vmem:[%s98 + $0xc] sm:$0xf]
    %v103 = vld [vmem:[%s98 + $0x10] sm:$0xf]
    %v104 = vld [vmem:[%s98 + $0x14] sm:$0xf]
    %v105 = vld [vmem:[%s98 + $0x18] sm:$0xf]
    %v106 = vld [vmem:[%s98 + $0x1c] sm:$0xf]
    %v107 = vld [vmem:[%s98 + $0x20] sm:$0xf]
    %v108 = vld [vmem:[%s98 + $0x24] sm:$0xf]
    %v109 = vld [vmem:[%s98 + $0x28] sm:$0xf]
    %v110 = vld [vmem:[%s98 + $0x2c] sm:$0xf]
    %v111 = vld [vmem:[%s98 + $0x30] sm:$0xf]
    %v112 = vld [vmem:[%s98 + $0x34] sm:$0xf]
    %v113 = vld [vmem:[%s98 + $0x38] sm:$0xf]
    %v114 = vld [vmem:[%s98 + $0x3c] sm:$0xf]
    %v115 = vld [vmem:[%s2] sm:$0x1]
    %v117 = vlaneseq
    %v118 = vshrl.u32 %v117, 7
    %v119 = vsub.s32 0, %v118
    %v120 = vrot.slane %v115, %v119
    %v138 = vunpack.c.l.b16 %v81
    %v139 = vunpack.c.l.b16 %v82
    %v140 = vunpack.c.l.b16 %v83
    %v141 = vunpack.c.l.b16 %v84
    %v142 = vunpack.c.l.b16 %v85
    %v143 = vunpack.c.l.b16 %v86
    %v144 = vunpack.c.l.b16 %v87
    %v145 = vunpack.c.l.b16 %v88
    %v146 = vunpack.c.l.b16 %v89
    %v147 = vunpack.c.l.b16 %v90
    %v148 = vunpack.c.l.b16 %v91
    %v149 = vunpack.c.l.b16 %v92
    %v150 = vunpack.c.l.b16 %v93
    %v151 = vunpack.c.l.b16 %v94
    %v152 = vunpack.c.l.b16 %v95
    %v153 = vunpack.c.l.b16 %v96
    %v154 = vpack.c.b16 %v139, %v138
    %v155 = vpack.c.b16 %v141, %v140
    %v156 = vpack.c.b16 %v143, %v142
    %v157 = vpack.c.b16 %v145, %v144
    %v158 = vpack.c.b16 %v147, %v146
    %v159 = vpack.c.b16 %v149, %v148
    %v160 = vpack.c.b16 %v151, %v150
    %v161 = vpack.c.b16 %v153, %v152
    %v186 = vunpack.c.l.b16 %v61
    %v187 = vunpack.c.l.b16 %v62
    %v188 = vunpack.c.l.b16 %v63
    %v189 = vunpack.c.l.b16 %v64
    %v190 = vunpack.c.l.b16 %v65
    %v191 = vunpack.c.l.b16 %v66
    %v192 = vunpack.c.l.b16 %v67
    %v193 = vunpack.c.l.b16 %v68
    %v194 = vunpack.c.l.b16 %v69
    %v195 = vunpack.c.l.b16 %v70
    %v196 = vunpack.c.l.b16 %v71
    %v197 = vunpack.c.l.b16 %v72
    %v198 = vunpack.c.l.b16 %v73
    %v199 = vunpack.c.l.b16 %v74
    %v200 = vunpack.c.l.b16 %v75
    %v201 = vunpack.c.l.b16 %v76
    %v202 = vpack.c.b16 %v187, %v186
    %v203 = vpack.c.b16 %v189, %v188
    %v204 = vpack.c.b16 %v191, %v190
    %v205 = vpack.c.b16 %v193, %v192
    %v206 = vpack.c.b16 %v195, %v194
    %v207 = vpack.c.b16 %v197, %v196
    %v208 = vpack.c.b16 %v199, %v198
    %v209 = vpack.c.b16 %v201, %v200
    %218 = vmatprep.subr.bf16.mxu0 0
    %219 = vmatpush1.bf16.xpose.msra.mxu0 %v202
    %220 = vmatprep.subr.bf16.mxu0 0
    %221 = vmatpush1.bf16.xpose.msra.mxu0 %v203
    %222 = vmatprep.subr.bf16.mxu0 0
    %223 = vmatpush1.bf16.xpose.msra.mxu0 %v204
    %224 = vmatprep.subr.bf16.mxu0 0
    %225 = vmatpush1.bf16.xpose.msra.mxu0 %v205
    %226 = vmatprep.subr.bf16.mxu0 0
    %227 = vmatpush1.bf16.xpose.msra.mxu0 %v206
    %228 = vmatprep.subr.bf16.mxu0 0
    %229 = vmatpush1.bf16.xpose.msra.mxu0 %v207
    %230 = vmatprep.subr.bf16.mxu0 0
    %231 = vmatpush1.bf16.xpose.msra.mxu0 %v208
    %232 = vmatprep.subr.bf16.mxu0 0
    %233 = vmatpush1.bf16.xpose.msra.mxu0 %v209
    %234 = vmatprep.subr.bf16.mxu0 0
    %235 = vmatpush1.bf16.xpose.msra.mxu0 0
    %236 = vmatprep.subr.bf16.mxu0 0
    %237 = vmatpush1.bf16.xpose.msra.mxu0 0
    %238 = vmatprep.subr.bf16.mxu0 0
    %239 = vmatpush1.bf16.xpose.msra.mxu0 0
    %240 = vmatprep.subr.bf16.mxu0 0
    %241 = vmatpush1.bf16.xpose.msra.mxu0 0
    %242 = vmatprep.subr.bf16.mxu0 0
    %243 = vmatpush1.bf16.xpose.msra.mxu0 0
    %244 = vmatprep.subr.bf16.mxu0 0
    %245 = vmatpush1.bf16.xpose.msra.mxu0 0
    %246 = vmatprep.subr.bf16.mxu0 0
    %247 = vmatpush1.bf16.xpose.msra.mxu0 0
    %248 = vmatprep.subr.bf16.mxu0 0
    %249 = vmatpush1.bf16.xpose.msra.mxu0 0
    %250 = vmatprep.mubr.bf16.mxu0 0
    %251 = vmatmul.mubr.bf16.gmra.mrb[0].mxu0 %v154
    %v252 = vpop.f32.mrb[0].mxu0
    %v253 = vadd.f32 %v120, %v252
    %v254 = vpop.f32.mrb[0].mxu0
    %v255 = vpop.f32.mrb[0].mxu0
    %v256 = vadd.f32 %v120, %v255
    %v257 = vpop.f32.mrb[0].mxu0
    %258 = vmatprep.mubr.bf16.mxu0 0
    %259 = vmatmul.mubr.bf16.gmra.mrb[0].mxu0 %v155
    %v260 = vpop.f32.mrb[0].mxu0
    %v261 = vadd.f32 %v120, %v260
    %v262 = vpop.f32.mrb[0].mxu0
    %v263 = vpop.f32.mrb[0].mxu0
    %v264 = vadd.f32 %v120, %v263
    %v265 = vpop.f32.mrb[0].mxu0
    %266 = vmatprep.mubr.bf16.mxu0 0
    %267 = vmatmul.mubr.bf16.gmra.mrb[0].mxu0 %v156
    %v268 = vpop.f32.mrb[0].mxu0
    %v269 = vadd.f32 %v120, %v268
    %v270 = vpop.f32.mrb[0].mxu0
    %v271 = vpop.f32.mrb[0].mxu0
    %v272 = vadd.f32 %v120, %v271
    %v273 = vpop.f32.mrb[0].mxu0
    %274 = vmatprep.mubr.bf16.mxu0 0
    %275 = vmatmul.mubr.bf16.gmra.mrb[0].mxu0 %v157
    %v276 = vpop.f32.mrb[0].mxu0
    %v277 = vadd.f32 %v120, %v276
    %v278 = vpop.f32.mrb[0].mxu0
    %v279 = vpop.f32.mrb[0].mxu0
    %v280 = vadd.f32 %v120, %v279
    %v281 = vpop.f32.mrb[0].mxu0
    %282 = vmatprep.mubr.bf16.mxu0 0
    %283 = vmatmul.mubr.bf16.gmra.mrb[0].mxu0 %v158
    %v284 = vpop.f32.mrb[0].mxu0
    %v285 = vadd.f32 %v120, %v284
    %v286 = vpop.f32.mrb[0].mxu0
    %v287 = vpop.f32.mrb[0].mxu0
    %v288 = vadd.f32 %v120, %v287
    %v289 = vpop.f32.mrb[0].mxu0
    %290 = vmatprep.mubr.bf16.mxu0 0
    %291 = vmatmul.mubr.bf16.gmra.mrb[0].mxu0 %v159
    %v292 = vpop.f32.mrb[0].mxu0
    %v293 = vadd.f32 %v120, %v292
    %v294 = vpop.f32.mrb[0].mxu0
    %v295 = vpop.f32.mrb[0].mxu0
    %v296 = vadd.f32 %v120, %v295
    %v297 = vpop.f32.mrb[0].mxu0
    %298 = vmatprep.mubr.bf16.mxu0 0
    %299 = vmatmul.mubr.bf16.gmra.mrb[0].mxu0 %v160
    %v300 = vpop.f32.mrb[0].mxu0
    %v301 = vadd.f32 %v120, %v300
    %v302 = vpop.f32.mrb[0].mxu0
    %v303 = vpop.f32.mrb[0].mxu0
    %v304 = vadd.f32 %v120, %v303
    %v305 = vpop.f32.mrb[0].mxu0
    %306 = vmatprep.mubr.bf16.mxu0 0
    %307 = vmatmul.mubr.bf16.gmra.mrb[0].mxu0 %v161
    %v308 = vpop.f32.mrb[0].mxu0
    %v309 = vadd.f32 %v120, %v308
    %v310 = vpop.f32.mrb[0].mxu0
    %v311 = vpop.f32.mrb[0].mxu0
    %v312 = vadd.f32 %v120, %v311
    %v313 = vpop.f32.mrb[0].mxu0
    %314 = vdwg.mxu0
    %v331 = vunpack.c.l.b16 %v99
    %v332 = vunpack.c.l.b16 %v100
    %v333 = vunpack.c.l.b16 %v101
    %v334 = vunpack.c.l.b16 %v102
    %v335 = vunpack.c.l.b16 %v103
    %v336 = vunpack.c.l.b16 %v104
    %v337 = vunpack.c.l.b16 %v105
    %v338 = vunpack.c.l.b16 %v106
    %v339 = vunpack.c.l.b16 %v107
    %v340 = vunpack.c.l.b16 %v108
    %v341 = vunpack.c.l.b16 %v109
    %v342 = vunpack.c.l.b16 %v110
    %v343 = vunpack.c.l.b16 %v111
    %v344 = vunpack.c.l.b16 %v112
    %v345 = vunpack.c.l.b16 %v113
    %v346 = vunpack.c.l.b16 %v114
    %v347 = vpack.c.b16 %v332, %v331
    %v348 = vpack.c.b16 %v334, %v333
    %v349 = vpack.c.b16 %v336, %v335
    %v350 = vpack.c.b16 %v338, %v337
    %v351 = vpack.c.b16 %v340, %v339
    %v352 = vpack.c.b16 %v342, %v341
    %v353 = vpack.c.b16 %v344, %v343
    %v354 = vpack.c.b16 %v346, %v345
    %v379 = vunpack.c.l.b16 %v45
    %v380 = vunpack.c.l.b16 %v46
    %v381 = vunpack.c.l.b16 %v47
    %v382 = vunpack.c.l.b16 %v48
    %v383 = vunpack.c.l.b16 %v49
    %v384 = vunpack.c.l.b16 %v50
    %v385 = vunpack.c.l.b16 %v51
    %v386 = vunpack.c.l.b16 %v52
    %v387 = vunpack.c.l.b16 %v53
    %v388 = vunpack.c.l.b16 %v54
    %v389 = vunpack.c.l.b16 %v55
    %v390 = vunpack.c.l.b16 %v56
    %v391 = vunpack.c.l.b16 %v57
    %v392 = vunpack.c.l.b16 %v58
    %v393 = vunpack.c.l.b16 %v59
    %v394 = vunpack.c.l.b16 %v60
    %v395 = vpack.c.b16 %v380, %v379
    %v396 = vpack.c.b16 %v382, %v381
    %v397 = vpack.c.b16 %v384, %v383
    %v398 = vpack.c.b16 %v386, %v385
    %v399 = vpack.c.b16 %v388, %v387
    %v400 = vpack.c.b16 %v390, %v389
    %v401 = vpack.c.b16 %v392, %v391
    %v402 = vpack.c.b16 %v394, %v393
    %411 = vmatprep.subr.bf16.mxu0 0
    %412 = vmatpush1.bf16.xpose.msra.mxu0 %v395
    %413 = vmatprep.subr.bf16.mxu0 0
    %414 = vmatpush1.bf16.xpose.msra.mxu0 %v396
    %415 = vmatprep.subr.bf16.mxu0 0
    %416 = vmatpush1.bf16.xpose.msra.mxu0 %v397
    %417 = vmatprep.subr.bf16.mxu0 0
    %418 = vmatpush1.bf16.xpose.msra.mxu0 %v398
    %419 = vmatprep.subr.bf16.mxu0 0
    %420 = vmatpush1.bf16.xpose.msra.mxu0 %v399
    %421 = vmatprep.subr.bf16.mxu0 0
    %422 = vmatpush1.bf16.xpose.msra.mxu0 %v400
    %423 = vmatprep.subr.bf16.mxu0 0
    %424 = vmatpush1.bf16.xpose.msra.mxu0 %v401
    %425 = vmatprep.subr.bf16.mxu0 0
    %426 = vmatpush1.bf16.xpose.msra.mxu0 %v402
    %427 = vmatprep.subr.bf16.mxu0 0
    %428 = vmatpush1.bf16.xpose.msra.mxu0 0
    %429 = vmatprep.subr.bf16.mxu0 0
    %430 = vmatpush1.bf16.xpose.msra.mxu0 0
    %431 = vmatprep.subr.bf16.mxu0 0
    %432 = vmatpush1.bf16.xpose.msra.mxu0 0
    %433 = vmatprep.subr.bf16.mxu0 0
    %434 = vmatpush1.bf16.xpose.msra.mxu0 0
    %435 = vmatprep.subr.bf16.mxu0 0
    %436 = vmatpush1.bf16.xpose.msra.mxu0 0
    %437 = vmatprep.subr.bf16.mxu0 0
    %438 = vmatpush1.bf16.xpose.msra.mxu0 0
    %439 = vmatprep.subr.bf16.mxu0 0
    %440 = vmatpush1.bf16.xpose.msra.mxu0 0
    %441 = vmatprep.subr.bf16.mxu0 0
    %442 = vmatpush1.bf16.xpose.msra.mxu0 0
    %443 = vmatprep.mubr.bf16.mxu0 0
    %444 = vmatmul.mubr.bf16.gmra.mrb[0].mxu0 %v347
    %v445 = vpop.f32.mrb[0].mxu0
    %v446 = vadd.f32 %v120, %v445
    %v447 = vpop.f32.mrb[0].mxu0
    %v448 = vpop.f32.mrb[0].mxu0
    %v449 = vadd.f32 %v120, %v448
    %v450 = vpop.f32.mrb[0].mxu0
    %451 = vmatprep.mubr.bf16.mxu0 0
    %452 = vmatmul.mubr.bf16.gmra.mrb[0].mxu0 %v348
    %v453 = vpop.f32.mrb[0].mxu0
    %v454 = vadd.f32 %v120, %v453
    %v455 = vpop.f32.mrb[0].mxu0
    %v456 = vpop.f32.mrb[0].mxu0
    %v457 = vadd.f32 %v120, %v456
    %v458 = vpop.f32.mrb[0].mxu0
    %459 = vmatprep.mubr.bf16.mxu0 0
    %460 = vmatmul.mubr.bf16.gmra.mrb[0].mxu0 %v349
    %v461 = vpop.f32.mrb[0].mxu0
    %v462 = vadd.f32 %v120, %v461
    %v463 = vpop.f32.mrb[0].mxu0
    %v464 = vpop.f32.mrb[0].mxu0
    %v465 = vadd.f32 %v120, %v464
    %v466 = vpop.f32.mrb[0].mxu0
    %467 = vmatprep.mubr.bf16.mxu0 0
    %468 = vmatmul.mubr.bf16.gmra.mrb[0].mxu0 %v350
    %v469 = vpop.f32.mrb[0].mxu0
    %v470 = vadd.f32 %v120, %v469
    %v471 = vpop.f32.mrb[0].mxu0
    %v472 = vpop.f32.mrb[0].mxu0
    %v473 = vadd.f32 %v120, %v472
    %v474 = vpop.f32.mrb[0].mxu0
    %475 = vmatprep.mubr.bf16.mxu0 0
    %476 = vmatmul.mubr.bf16.gmra.mrb[0].mxu0 %v351
    %v477 = vpop.f32.mrb[0].mxu0
    %v478 = vadd.f32 %v120, %v477
    %v479 = vpop.f32.mrb[0].mxu0
    %v480 = vpop.f32.mrb[0].mxu0
    %v481 = vadd.f32 %v120, %v480
    %v482 = vpop.f32.mrb[0].mxu0
    %483 = vmatprep.mubr.bf16.mxu0 0
    %484 = vmatmul.mubr.bf16.gmra.mrb[0].mxu0 %v352
    %v485 = vpop.f32.mrb[0].mxu0
    %v486 = vadd.f32 %v120, %v485
    %v487 = vpop.f32.mrb[0].mxu0
    %v488 = vpop.f32.mrb[0].mxu0
    %v489 = vadd.f32 %v120, %v488
    %v490 = vpop.f32.mrb[0].mxu0
    %491 = vmatprep.mubr.bf16.mxu0 0
    %492 = vmatmul.mubr.bf16.gmra.mrb[0].mxu0 %v353
    %v493 = vpop.f32.mrb[0].mxu0
    %v494 = vadd.f32 %v120, %v493
    %v495 = vpop.f32.mrb[0].mxu0
    %v496 = vpop.f32.mrb[0].mxu0
    %v497 = vadd.f32 %v120, %v496
    %v498 = vpop.f32.mrb[0].mxu0
    %499 = vmatprep.mubr.bf16.mxu0 0
    %500 = vmatmul.mubr.bf16.gmra.mrb[0].mxu0 %v354
    %v501 = vpop.f32.mrb[0].mxu0
    %v502 = vadd.f32 %v120, %v501
    %v503 = vpop.f32.mrb[0].mxu0
    %v504 = vpop.f32.mrb[0].mxu0
    %v505 = vadd.f32 %v120, %v504
    %v506 = vpop.f32.mrb[0].mxu0
    %507 = vdwg.mxu0
    %v508 = vunpack.c.l.bf16 %v81
    %v509 = vunpack.c.l.bf16 %v82
    %v510 = vunpack.c.l.bf16 %v83
    %v511 = vunpack.c.l.bf16 %v84
    %v512 = vunpack.c.l.bf16 %v85
    %v513 = vunpack.c.l.bf16 %v86
    %v514 = vunpack.c.l.bf16 %v87
    %v515 = vunpack.c.l.bf16 %v88
    %v516 = vunpack.c.l.bf16 %v89
    %v517 = vunpack.c.l.bf16 %v90
    %v518 = vunpack.c.l.bf16 %v91
    %v519 = vunpack.c.l.bf16 %v92
    %v520 = vunpack.c.l.bf16 %v93
    %v521 = vunpack.c.l.bf16 %v94
    %v522 = vunpack.c.l.bf16 %v95
    %v523 = vunpack.c.l.bf16 %v96
    %v524 = vunpack.c.l.bf16 %v99
    %v525 = vunpack.c.l.bf16 %v100
    %v526 = vunpack.c.l.bf16 %v101
    %v527 = vunpack.c.l.bf16 %v102
    %v528 = vunpack.c.l.bf16 %v103
    %v529 = vunpack.c.l.bf16 %v104
    %v530 = vunpack.c.l.bf16 %v105
    %v531 = vunpack.c.l.bf16 %v106
    %v532 = vunpack.c.l.bf16 %v107
    %v533 = vunpack.c.l.bf16 %v108
    %v534 = vunpack.c.l.bf16 %v109
    %v535 = vunpack.c.l.bf16 %v110
    %v536 = vunpack.c.l.bf16 %v111
    %v537 = vunpack.c.l.bf16 %v112
    %v538 = vunpack.c.l.bf16 %v113
    %v539 = vunpack.c.l.bf16 %v114
    %v540 = vmul.f32 %v508, %v524
    %v541 = vmul.f32 %v509, %v525
    %v542 = vmul.f32 %v510, %v526
    %v543 = vmul.f32 %v511, %v527
    %v544 = vmul.f32 %v512, %v528
    %v545 = vmul.f32 %v513, %v529
    %v546 = vmul.f32 %v514, %v530
    %v547 = vmul.f32 %v515, %v531
    %v548 = vmul.f32 %v516, %v532
    %v549 = vmul.f32 %v517, %v533
    %v550 = vmul.f32 %v518, %v534
    %v551 = vmul.f32 %v519, %v535
    %v552 = vmul.f32 %v520, %v536
    %v553 = vmul.f32 %v521, %v537
    %v554 = vmul.f32 %v522, %v538
    %v555 = vmul.f32 %v523, %v539
    %556 = vadd.xlane.f32.xlu0 %v540
    %v557 = vpop.xlane.xlu0 %556
    %558 = vadd.xlane.f32.xlu0 %v541
    %v559 = vpop.xlane.xlu0 %558
    %560 = vadd.xlane.f32.xlu0 %v542
    %v561 = vpop.xlane.xlu0 %560
    %562 = vadd.xlane.f32.xlu0 %v543
    %v563 = vpop.xlane.xlu0 %562
    %564 = vadd.xlane.f32.xlu0 %v544
    %v565 = vpop.xlane.xlu0 %564
    %566 = vadd.xlane.f32.xlu0 %v545
    %v567 = vpop.xlane.xlu0 %566
    %568 = vadd.xlane.f32.xlu0 %v546
    %v569 = vpop.xlane.xlu0 %568
    %570 = vadd.xlane.f32.xlu0 %v547
    %v571 = vpop.xlane.xlu0 %570
    %572 = vadd.xlane.f32.xlu0 %v548
    %v573 = vpop.xlane.xlu0 %572
    %574 = vadd.xlane.f32.xlu0 %v549
    %v575 = vpop.xlane.xlu0 %574
    %576 = vadd.xlane.f32.xlu0 %v550
    %v577 = vpop.xlane.xlu0 %576
    %578 = vadd.xlane.f32.xlu0 %v551
    %v579 = vpop.xlane.xlu0 %578
    %580 = vadd.xlane.f32.xlu0 %v552
    %v581 = vpop.xlane.xlu0 %580
    %582 = vadd.xlane.f32.xlu0 %v553
    %v583 = vpop.xlane.xlu0 %582
    %584 = vadd.xlane.f32.xlu0 %v554
    %v585 = vpop.xlane.xlu0 %584
    %586 = vadd.xlane.f32.xlu0 %v555
    %v587 = vpop.xlane.xlu0 %586
    %588 = vmax.xlane.f32.xlu0 %v253
    %v589 = vpop.xlane.xlu0 %588
    %590 = vmax.xlane.f32.xlu0 %v256
    %v591 = vpop.xlane.xlu0 %590
    %592 = vmax.xlane.f32.xlu0 %v261
    %v593 = vpop.xlane.xlu0 %592
    %594 = vmax.xlane.f32.xlu0 %v264
    %v595 = vpop.xlane.xlu0 %594
    %596 = vmax.xlane.f32.xlu0 %v269
    %v597 = vpop.xlane.xlu0 %596
    %598 = vmax.xlane.f32.xlu0 %v272
    %v599 = vpop.xlane.xlu0 %598
    %600 = vmax.xlane.f32.xlu0 %v277
    %v601 = vpop.xlane.xlu0 %600
    %602 = vmax.xlane.f32.xlu0 %v280
    %v603 = vpop.xlane.xlu0 %602
    %604 = vmax.xlane.f32.xlu0 %v285
    %v605 = vpop.xlane.xlu0 %604
    %606 = vmax.xlane.f32.xlu0 %v288
    %v607 = vpop.xlane.xlu0 %606
    %608 = vmax.xlane.f32.xlu0 %v293
    %v609 = vpop.xlane.xlu0 %608
    %610 = vmax.xlane.f32.xlu0 %v296
    %v611 = vpop.xlane.xlu0 %610
    %612 = vmax.xlane.f32.xlu0 %v301
    %v613 = vpop.xlane.xlu0 %612
    %614 = vmax.xlane.f32.xlu0 %v304
    %v615 = vpop.xlane.xlu0 %614
    %616 = vmax.xlane.f32.xlu0 %v309
    %v617 = vpop.xlane.xlu0 %616
    %618 = vmax.xlane.f32.xlu0 %v312
    %v619 = vpop.xlane.xlu0 %618
    %v620 = vsub.f32 %v253, %v589
    %v621 = vsub.f32 %v256, %v591
    %v622 = vsub.f32 %v261, %v593
    %v623 = vsub.f32 %v264, %v595
    %v624 = vsub.f32 %v269, %v597
    %v625 = vsub.f32 %v272, %v599
    %v626 = vsub.f32 %v277, %v601
    %v627 = vsub.f32 %v280, %v603
    %v628 = vsub.f32 %v285, %v605
    %v629 = vsub.f32 %v288, %v607
    %v630 = vsub.f32 %v293, %v609
    %v631 = vsub.f32 %v296, %v611
    %v632 = vsub.f32 %v301, %v613
    %v633 = vsub.f32 %v304, %v615
    %v634 = vsub.f32 %v309, %v617
    %v635 = vsub.f32 %v312, %v619
    %v636 = vmul.f32 %v620, 1.442695
    %v637 = vpow.pop %v636
    %v638 = vmul.f32 %v621, 1.442695
    %v639 = vpow.pop %v638
    %v640 = vmul.f32 %v622, 1.442695
    %v641 = vpow.pop %v640
    %v642 = vmul.f32 %v623, 1.442695
    %v643 = vpow.pop %v642
    %v644 = vmul.f32 %v624, 1.442695
    %v645 = vpow.pop %v644
    %v646 = vmul.f32 %v625, 1.442695
    %v647 = vpow.pop %v646
    %v648 = vmul.f32 %v626, 1.442695
    %v649 = vpow.pop %v648
    %v650 = vmul.f32 %v627, 1.442695
    %v651 = vpow.pop %v650
    %v652 = vmul.f32 %v628, 1.442695
    %v653 = vpow.pop %v652
    %v654 = vmul.f32 %v629, 1.442695
    %v655 = vpow.pop %v654
    %v656 = vmul.f32 %v630, 1.442695
    %v657 = vpow.pop %v656
    %v658 = vmul.f32 %v631, 1.442695
    %v659 = vpow.pop %v658
    %v660 = vmul.f32 %v632, 1.442695
    %v661 = vpow.pop %v660
    %v662 = vmul.f32 %v633, 1.442695
    %v663 = vpow.pop %v662
    %v664 = vmul.f32 %v634, 1.442695
    %v665 = vpow.pop %v664
    %v666 = vmul.f32 %v635, 1.442695
    %v667 = vpow.pop %v666
    %668 = vadd.xlane.f32.xlu0 %v637
    %v669 = vpop.xlane.xlu0 %668
    %670 = vadd.xlane.f32.xlu0 %v639
    %v671 = vpop.xlane.xlu0 %670
    %672 = vadd.xlane.f32.xlu0 %v641
    %v673 = vpop.xlane.xlu0 %672
    %674 = vadd.xlane.f32.xlu0 %v643
    %v675 = vpop.xlane.xlu0 %674
    %676 = vadd.xlane.f32.xlu0 %v645
    %v677 = vpop.xlane.xlu0 %676
    %678 = vadd.xlane.f32.xlu0 %v647
    %v679 = vpop.xlane.xlu0 %678
    %680 = vadd.xlane.f32.xlu0 %v649
    %v681 = vpop.xlane.xlu0 %680
    %682 = vadd.xlane.f32.xlu0 %v651
    %v683 = vpop.xlane.xlu0 %682
    %684 = vadd.xlane.f32.xlu0 %v653
    %v685 = vpop.xlane.xlu0 %684
    %686 = vadd.xlane.f32.xlu0 %v655
    %v687 = vpop.xlane.xlu0 %686
    %688 = vadd.xlane.f32.xlu0 %v657
    %v689 = vpop.xlane.xlu0 %688
    %690 = vadd.xlane.f32.xlu0 %v659
    %v691 = vpop.xlane.xlu0 %690
    %692 = vadd.xlane.f32.xlu0 %v661
    %v693 = vpop.xlane.xlu0 %692
    %694 = vadd.xlane.f32.xlu0 %v663
    %v695 = vpop.xlane.xlu0 %694
    %696 = vadd.xlane.f32.xlu0 %v665
    %v697 = vpop.xlane.xlu0 %696
    %698 = vadd.xlane.f32.xlu0 %v667
    %v699 = vpop.xlane.xlu0 %698
    %v700 = vlog2.pop %v669
    %v701 = vmul.f32 %v700, 0.6931472
    %v702 = vlog2.pop %v671
    %v703 = vmul.f32 %v702, 0.6931472
    %v704 = vlog2.pop %v673
    %v705 = vmul.f32 %v704, 0.6931472
    %v706 = vlog2.pop %v675
    %v707 = vmul.f32 %v706, 0.6931472
    %v708 = vlog2.pop %v677
    %v709 = vmul.f32 %v708, 0.6931472
    %v710 = vlog2.pop %v679
    %v711 = vmul.f32 %v710, 0.6931472
    %v712 = vlog2.pop %v681
    %v713 = vmul.f32 %v712, 0.6931472
    %v714 = vlog2.pop %v683
    %v715 = vmul.f32 %v714, 0.6931472
    %v716 = vlog2.pop %v685
    %v717 = vmul.f32 %v716, 0.6931472
    %v718 = vlog2.pop %v687
    %v719 = vmul.f32 %v718, 0.6931472
    %v720 = vlog2.pop %v689
    %v721 = vmul.f32 %v720, 0.6931472
    %v722 = vlog2.pop %v691
    %v723 = vmul.f32 %v722, 0.6931472
    %v724 = vlog2.pop %v693
    %v725 = vmul.f32 %v724, 0.6931472
    %v726 = vlog2.pop %v695
    %v727 = vmul.f32 %v726, 0.6931472
    %v728 = vlog2.pop %v697
    %v729 = vmul.f32 %v728, 0.6931472
    %v730 = vlog2.pop %v699
    %v731 = vmul.f32 %v730, 0.6931472
    %v732 = vadd.f32 %v589, %v701
    %v733 = vadd.f32 %v591, %v703
    %v734 = vadd.f32 %v593, %v705
    %v735 = vadd.f32 %v595, %v707
    %v736 = vadd.f32 %v597, %v709
    %v737 = vadd.f32 %v599, %v711
    %v738 = vadd.f32 %v601, %v713
    %v739 = vadd.f32 %v603, %v715
    %v740 = vadd.f32 %v605, %v717
    %v741 = vadd.f32 %v607, %v719
    %v742 = vadd.f32 %v609, %v721
    %v743 = vadd.f32 %v611, %v723
    %v744 = vadd.f32 %v613, %v725
    %v745 = vadd.f32 %v615, %v727
    %v746 = vadd.f32 %v617, %v729
    %v747 = vadd.f32 %v619, %v731
    %v748 = vsub.f32 %v732, %v557
    %v749 = vsub.f32 %v733, %v559
    %v750 = vsub.f32 %v734, %v561
    %v751 = vsub.f32 %v735, %v563
    %v752 = vsub.f32 %v736, %v565
    %v753 = vsub.f32 %v737, %v567
    %v754 = vsub.f32 %v738, %v569
    %v755 = vsub.f32 %v739, %v571
    %v756 = vsub.f32 %v740, %v573
    %v757 = vsub.f32 %v741, %v575
    %v758 = vsub.f32 %v742, %v577
    %v759 = vsub.f32 %v743, %v579
    %v760 = vsub.f32 %v744, %v581
    %v761 = vsub.f32 %v745, %v583
    %v762 = vsub.f32 %v746, %v585
    %v763 = vsub.f32 %v747, %v587
    %764 = vmax.xlane.f32.xlu0 %v446
    %v765 = vpop.xlane.xlu0 %764
    %766 = vmax.xlane.f32.xlu0 %v449
    %v767 = vpop.xlane.xlu0 %766
    %768 = vmax.xlane.f32.xlu0 %v454
    %v769 = vpop.xlane.xlu0 %768
    %770 = vmax.xlane.f32.xlu0 %v457
    %v771 = vpop.xlane.xlu0 %770
    %772 = vmax.xlane.f32.xlu0 %v462
    %v773 = vpop.xlane.xlu0 %772
    %774 = vmax.xlane.f32.xlu0 %v465
    %v775 = vpop.xlane.xlu0 %774
    %776 = vmax.xlane.f32.xlu0 %v470
    %v777 = vpop.xlane.xlu0 %776
    %778 = vmax.xlane.f32.xlu0 %v473
    %v779 = vpop.xlane.xlu0 %778
    %780 = vmax.xlane.f32.xlu0 %v478
    %v781 = vpop.xlane.xlu0 %780
    %782 = vmax.xlane.f32.xlu0 %v481
    %v783 = vpop.xlane.xlu0 %782
    %784 = vmax.xlane.f32.xlu0 %v486
    %v785 = vpop.xlane.xlu0 %784
    %786 = vmax.xlane.f32.xlu0 %v489
    %v787 = vpop.xlane.xlu0 %786
    %788 = vmax.xlane.f32.xlu0 %v494
    %v789 = vpop.xlane.xlu0 %788
    %790 = vmax.xlane.f32.xlu0 %v497
    %v791 = vpop.xlane.xlu0 %790
    %792 = vmax.xlane.f32.xlu0 %v502
    %v793 = vpop.xlane.xlu0 %792
    %794 = vmax.xlane.f32.xlu0 %v505
    %v795 = vpop.xlane.xlu0 %794
    %v796 = vsub.f32 %v446, %v765
    %v797 = vsub.f32 %v449, %v767
    %v798 = vsub.f32 %v454, %v769
    %v799 = vsub.f32 %v457, %v771
    %v800 = vsub.f32 %v462, %v773
    %v801 = vsub.f32 %v465, %v775
    %v802 = vsub.f32 %v470, %v777
    %v803 = vsub.f32 %v473, %v779
    %v804 = vsub.f32 %v478, %v781
    %v805 = vsub.f32 %v481, %v783
    %v806 = vsub.f32 %v486, %v785
    %v807 = vsub.f32 %v489, %v787
    %v808 = vsub.f32 %v494, %v789
    %v809 = vsub.f32 %v497, %v791
    %v810 = vsub.f32 %v502, %v793
    %v811 = vsub.f32 %v505, %v795
    %v812 = vmul.f32 %v796, 1.442695
    %v813 = vpow.pop %v812
    %v814 = vmul.f32 %v797, 1.442695
    %v815 = vpow.pop %v814
    %v816 = vmul.f32 %v798, 1.442695
    %v817 = vpow.pop %v816
    %v818 = vmul.f32 %v799, 1.442695
    %v819 = vpow.pop %v818
    %v820 = vmul.f32 %v800, 1.442695
    %v821 = vpow.pop %v820
    %v822 = vmul.f32 %v801, 1.442695
    %v823 = vpow.pop %v822
    %v824 = vmul.f32 %v802, 1.442695
    %v825 = vpow.pop %v824
    %v826 = vmul.f32 %v803, 1.442695
    %v827 = vpow.pop %v826
    %v828 = vmul.f32 %v804, 1.442695
    %v829 = vpow.pop %v828
    %v830 = vmul.f32 %v805, 1.442695
    %v831 = vpow.pop %v830
    %v832 = vmul.f32 %v806, 1.442695
    %v833 = vpow.pop %v832
    %v834 = vmul.f32 %v807, 1.442695
    %v835 = vpow.pop %v834
    %v836 = vmul.f32 %v808, 1.442695
    %v837 = vpow.pop %v836
    %v838 = vmul.f32 %v809, 1.442695
    %v839 = vpow.pop %v838
    %v840 = vmul.f32 %v810, 1.442695
    %v841 = vpow.pop %v840
    %v842 = vmul.f32 %v811, 1.442695
    %v843 = vpow.pop %v842
    %844 = vadd.xlane.f32.xlu0 %v813
    %v845 = vpop.xlane.xlu0 %844
    %846 = vadd.xlane.f32.xlu0 %v815
    %v847 = vpop.xlane.xlu0 %846
    %848 = vadd.xlane.f32.xlu0 %v817
    %v849 = vpop.xlane.xlu0 %848
    %850 = vadd.xlane.f32.xlu0 %v819
    %v851 = vpop.xlane.xlu0 %850
    %852 = vadd.xlane.f32.xlu0 %v821
    %v853 = vpop.xlane.xlu0 %852
    %854 = vadd.xlane.f32.xlu0 %v823
    %v855 = vpop.xlane.xlu0 %854
    %856 = vadd.xlane.f32.xlu0 %v825
    %v857 = vpop.xlane.xlu0 %856
    %858 = vadd.xlane.f32.xlu0 %v827
    %v859 = vpop.xlane.xlu0 %858
    %860 = vadd.xlane.f32.xlu0 %v829
    %v861 = vpop.xlane.xlu0 %860
    %862 = vadd.xlane.f32.xlu0 %v831
    %v863 = vpop.xlane.xlu0 %862
    %864 = vadd.xlane.f32.xlu0 %v833
    %v865 = vpop.xlane.xlu0 %864
    %866 = vadd.xlane.f32.xlu0 %v835
    %v867 = vpop.xlane.xlu0 %866
    %868 = vadd.xlane.f32.xlu0 %v837
    %v869 = vpop.xlane.xlu0 %868
    %870 = vadd.xlane.f32.xlu0 %v839
    %v871 = vpop.xlane.xlu0 %870
    %872 = vadd.xlane.f32.xlu0 %v841
    %v873 = vpop.xlane.xlu0 %872
    %874 = vadd.xlane.f32.xlu0 %v843
    %v875 = vpop.xlane.xlu0 %874
    %v876 = vlog2.pop %v845
    %v877 = vmul.f32 %v876, 0.6931472
    %v878 = vlog2.pop %v847
    %v879 = vmul.f32 %v878, 0.6931472
    %v880 = vlog2.pop %v849
    %v881 = vmul.f32 %v880, 0.6931472
    %v882 = vlog2.pop %v851
    %v883 = vmul.f32 %v882, 0.6931472
    %v884 = vlog2.pop %v853
    %v885 = vmul.f32 %v884, 0.6931472
    %v886 = vlog2.pop %v855
    %v887 = vmul.f32 %v886, 0.6931472
    %v888 = vlog2.pop %v857
    %v889 = vmul.f32 %v888, 0.6931472
    %v890 = vlog2.pop %v859
    %v891 = vmul.f32 %v890, 0.6931472
    %v892 = vlog2.pop %v861
    %v893 = vmul.f32 %v892, 0.6931472
    %v894 = vlog2.pop %v863
    %v895 = vmul.f32 %v894, 0.6931472
    %v896 = vlog2.pop %v865
    %v897 = vmul.f32 %v896, 0.6931472
    %v898 = vlog2.pop %v867
    %v899 = vmul.f32 %v898, 0.6931472
    %v900 = vlog2.pop %v869
    %v901 = vmul.f32 %v900, 0.6931472
    %v902 = vlog2.pop %v871
    %v903 = vmul.f32 %v902, 0.6931472
    %v904 = vlog2.pop %v873
    %v905 = vmul.f32 %v904, 0.6931472
    %v906 = vlog2.pop %v875
    %v907 = vmul.f32 %v906, 0.6931472
    %v908 = vadd.f32 %v765, %v877
    %v909 = vadd.f32 %v767, %v879
    %v910 = vadd.f32 %v769, %v881
    %v911 = vadd.f32 %v771, %v883
    %v912 = vadd.f32 %v773, %v885
    %v913 = vadd.f32 %v775, %v887
    %v914 = vadd.f32 %v777, %v889
    %v915 = vadd.f32 %v779, %v891
    %v916 = vadd.f32 %v781, %v893
    %v917 = vadd.f32 %v783, %v895
    %v918 = vadd.f32 %v785, %v897
    %v919 = vadd.f32 %v787, %v899
    %v920 = vadd.f32 %v789, %v901
    %v921 = vadd.f32 %v791, %v903
    %v922 = vadd.f32 %v793, %v905
    %v923 = vadd.f32 %v795, %v907
    %v924 = vsub.f32 %v908, %v557
    %v925 = vsub.f32 %v909, %v559
    %v926 = vsub.f32 %v910, %v561
    %v927 = vsub.f32 %v911, %v563
    %v928 = vsub.f32 %v912, %v565
    %v929 = vsub.f32 %v913, %v567
    %v930 = vsub.f32 %v914, %v569
    %v931 = vsub.f32 %v915, %v571
    %v932 = vsub.f32 %v916, %v573
    %v933 = vsub.f32 %v917, %v575
    %v934 = vsub.f32 %v918, %v577
    %v935 = vsub.f32 %v919, %v579
    %v936 = vsub.f32 %v920, %v581
    %v937 = vsub.f32 %v921, %v583
    %v938 = vsub.f32 %v922, %v585
    %v939 = vsub.f32 %v923, %v587
    %v940 = vadd.f32 %v748, %v924
    %v941 = vadd.f32 %v749, %v925
    %v942 = vadd.f32 %v750, %v926
    %v943 = vadd.f32 %v751, %v927
    %v944 = vadd.f32 %v752, %v928
    %v945 = vadd.f32 %v753, %v929
    %v946 = vadd.f32 %v754, %v930
    %v947 = vadd.f32 %v755, %v931
    %v948 = vadd.f32 %v756, %v932
    %v949 = vadd.f32 %v757, %v933
    %v950 = vadd.f32 %v758, %v934
    %v951 = vadd.f32 %v759, %v935
    %v952 = vadd.f32 %v760, %v936
    %v953 = vadd.f32 %v761, %v937
    %v954 = vadd.f32 %v762, %v938
    %v955 = vadd.f32 %v763, %v939
    %v956 = vlaneseq
    %v957 = vshrl.u32 %v956, 7
    %v958 = vadd.s32 %v957, 8
    %v959 = vadd.s32 %v957, 16
    %v960 = vadd.s32 %v957, 24
    %v961 = vadd.s32 %v957, 32
    %v962 = vadd.s32 %v957, 40
    %v963 = vadd.s32 %v957, 48
    %v964 = vadd.s32 %v957, 56
    %v965 = vadd.s32 %v957, 64
    %v966 = vadd.s32 %v957, 72
    %v967 = vadd.s32 %v957, 80
    %v968 = vadd.s32 %v957, 88
    %v969 = vadd.s32 %v957, 96
    %v970 = vadd.s32 %v957, 104
    %v971 = vadd.s32 %v957, 112
    %v972 = vadd.s32 %v957, 120
    %v973 = vstv %s44
    %v974 = vadd.s32 %v973, %v957
    %v975 = vadd.s32 %v973, %v958
    %v976 = vadd.s32 %v973, %v959
    %v977 = vadd.s32 %v973, %v960
    %v978 = vadd.s32 %v973, %v961
    %v979 = vadd.s32 %v973, %v962
    %v980 = vadd.s32 %v973, %v963
    %v981 = vadd.s32 %v973, %v964
    %v982 = vadd.s32 %v973, %v965
    %v983 = vadd.s32 %v973, %v966
    %v984 = vadd.s32 %v973, %v967
    %v985 = vadd.s32 %v973, %v968
    %v986 = vadd.s32 %v973, %v969
    %v987 = vadd.s32 %v973, %v970
    %v988 = vadd.s32 %v973, %v971
    %v989 = vadd.s32 %v973, %v972
    %vm990 = vcmp.lt.s32.totalorder %v974, 8
    %vm991 = vcmp.lt.s32.totalorder %v975, 8
    %vm992 = vcmp.lt.s32.totalorder %v976, 8
    %vm993 = vcmp.lt.s32.totalorder %v977, 8
    %vm994 = vcmp.lt.s32.totalorder %v978, 8
    %vm995 = vcmp.lt.s32.totalorder %v979, 8
    %vm996 = vcmp.lt.s32.totalorder %v980, 8
    %vm997 = vcmp.lt.s32.totalorder %v981, 8
    %vm998 = vcmp.lt.s32.totalorder %v982, 8
    %vm999 = vcmp.lt.s32.totalorder %v983, 8
    %vm1000 = vcmp.lt.s32.totalorder %v984, 8
    %vm1001 = vcmp.lt.s32.totalorder %v985, 8
    %vm1002 = vcmp.lt.s32.totalorder %v986, 8
    %vm1003 = vcmp.lt.s32.totalorder %v987, 8
    %vm1004 = vcmp.lt.s32.totalorder %v988, 8
    %vm1005 = vcmp.lt.s32.totalorder %v989, 8
    %v1006 = vsel %vm990, %v940, 0.0
    %v1007 = vsel %vm991, %v941, 0.0
    %v1008 = vsel %vm992, %v942, 0.0
    %v1009 = vsel %vm993, %v943, 0.0
    %v1010 = vsel %vm994, %v944, 0.0
    %v1011 = vsel %vm995, %v945, 0.0
    %v1012 = vsel %vm996, %v946, 0.0
    %v1013 = vsel %vm997, %v947, 0.0
    %v1014 = vsel %vm998, %v948, 0.0
    %v1015 = vsel %vm999, %v949, 0.0
    %v1016 = vsel %vm1000, %v950, 0.0
    %v1017 = vsel %vm1001, %v951, 0.0
    %v1018 = vsel %vm1002, %v952, 0.0
    %v1019 = vsel %vm1003, %v953, 0.0
    %v1020 = vsel %vm1004, %v954, 0.0
    %v1021 = vsel %vm1005, %v955, 0.0
    %vm1022 = vcmask 7168
    %v1023 = vsel %vm1022, %v1006, 0.0
    %v1024 = vsel %vm1022, %v1007, 0.0
    %v1025 = vadd.f32 %v1023, %v1024
    %v1026 = vsel %vm1022, %v1008, 0.0
    %v1027 = vadd.f32 %v1025, %v1026
    %v1028 = vsel %vm1022, %v1009, 0.0
    %v1029 = vadd.f32 %v1027, %v1028
    %v1030 = vsel %vm1022, %v1010, 0.0
    %v1031 = vadd.f32 %v1029, %v1030
    %v1032 = vsel %vm1022, %v1011, 0.0
    %v1033 = vadd.f32 %v1031, %v1032
    %v1034 = vsel %vm1022, %v1012, 0.0
    %v1035 = vadd.f32 %v1033, %v1034
    %v1036 = vsel %vm1022, %v1013, 0.0
    %v1037 = vadd.f32 %v1035, %v1036
    %v1038 = vsel %vm1022, %v1014, 0.0
    %v1039 = vadd.f32 %v1037, %v1038
    %v1040 = vsel %vm1022, %v1015, 0.0
    %v1041 = vadd.f32 %v1039, %v1040
    %v1042 = vsel %vm1022, %v1016, 0.0
    %v1043 = vadd.f32 %v1041, %v1042
    %v1044 = vsel %vm1022, %v1017, 0.0
    %v1045 = vadd.f32 %v1043, %v1044
    %v1046 = vsel %vm1022, %v1018, 0.0
    %v1047 = vadd.f32 %v1045, %v1046
    %v1048 = vsel %vm1022, %v1019, 0.0
    %v1049 = vadd.f32 %v1047, %v1048
    %v1050 = vsel %vm1022, %v1020, 0.0
    %v1051 = vadd.f32 %v1049, %v1050
    %v1052 = vsel %vm1022, %v1021, 0.0
    %v1053 = vadd.f32 %v1051, %v1052
    %1054 = vadd.xlane.f32.xlu0 %v1053
    %v1055 = vpop.xlane.xlu0 %1054
    %v1056 = vrot.slane %v1055, 4
    %v1057 = vadd.f32 %v1055, %v1056
    %v1058 = vrot.slane %v1057, 2
    %v1059 = vadd.f32 %v1057, %v1058
    %v1060 = vrot.slane %v1059, 1
    %v1061 = vadd.f32 %v1059, %v1060
    %s1062 = vtos %v1061
    %v1063 = vstv %s1062
    %1064 = vst [vmem:[#allocation7] sm:$0xff] %v1063
    // Predicated region
    $region22: #{tpu_custom_call.1} parent=1 // pred_check
      _
    $region23: #{tpu_custom_call.1} parent=1 // pred_check_branch
      %1066 = sbr.rel (0) target = $region25
    $region24: #{tpu_custom_call.1} parent=1 // pred_region
      %s1068 = ssub.s32 128, 128
      %1069 = vsyncadd [#allocation4], %s1068
      %s1071 = sshll.u32 [#allocation7], 4
      %s1072 = int_to_ptr.vmem [resolvable:$true] %s1071
      %1074 = dma.vmem_to_hbm [thread:$0]  %s1072, 128, %s3, [#allocation4]
    $region25: #{tpu_custom_call.1} parent=1 // pred_fallthru
      _
    // Predicated region
    $region26: #{tpu_custom_call.1} parent=1 // pred_check
      _
    $region27: #{tpu_custom_call.1} parent=1 // pred_check_branch
      %1076 = sbr.rel (0) target = $region29
    $region28: #{tpu_custom_call.1} parent=1 // pred_region
      %1077 = dma.done [#allocation4], 128
    $region29: #{tpu_custom_call.1} parent=1 // pred_fallthru
      _
    %1078 = vsyncpa [#allocation3], 1
    %1079 = vsyncpa [#allocation6], 1
    %1080 = vsyncpa [#allocation4], 1

</llo_original>
